<compile_context>
chip_gen: v5e
topology: v5e:2x2
jax: 0.10.0
libtpu: 0.0.40
codegen_flags: <defaults>
</compile_context>

<pallas_src>
import jax
import jax.numpy as jnp
from jax.experimental import pallas as pl
from jax.experimental.pallas import tpu as pltpu


def _round_up(x, m):
    return ((x + m - 1) // m) * m


def mlp_kernel(x_ref, w1_ref, b1_ref, w2_ref, b2_ref, o_ref):
    # Hot path: two MXU matmuls with f32 accumulation + f32 bias add + clamp.
    x = x_ref[...]
    h = jnp.dot(x, w1_ref[...], preferred_element_type=jnp.float32) + b1_ref[...]
    # Downcast the hidden activation to the weight dtype for the second MXU
    # pass (a no-op when everything is f32).
    y = jnp.dot(h.astype(w2_ref.dtype), w2_ref[...],
                preferred_element_type=jnp.float32) + b2_ref[...]
    o_ref[...] = jnp.clip(y, 0.0, 10.0).astype(o_ref.dtype)
    # For very large H, tile the hidden dim inside the kernel (fori_loop over H
    # chunks accumulating into the output) to keep the f32 `h` tile small.


def mlp_forward(x, w1, b1, w2, b2, *, block_batch=None, compute_dtype=None,
                lane=128):
    """x: [B, D_in]; w1: [D_in, H]; b1: [*, H]; w2: [H, D_out]; b2: [*, D_out]."""
    B, D_in = x.shape
    H = w1.shape[1]
    D_out = w2.shape[1]
    out_dtype = x.dtype

    # --- MXU / lane-friendly padding of feature dims (zero-pad -> exact result).
    D_in_p = _round_up(D_in, lane)
    H_p = _round_up(H, lane)
    D_out_p = _round_up(D_out, lane)

    # --- Batch tiling: big enough to amortize the ~0.35us/step grid overhead
    #     and overlap DMA with compute, small enough to stay well under the
    #     v7x 64 MiB VMEM budget even with double-buffered tiles.
    if block_batch is None:
        block_batch = min(512, _round_up(B, 8))
    block_batch = max(8, _round_up(block_batch, 8))
    B_p = _round_up(B, block_batch)
    grid = (B_p // block_batch,)

    # --- Optional bf16 operands for v6e/v7x MXU (f32 accumulation preserved).
    if compute_dtype is not None:
        x = x.astype(compute_dtype)
        w1 = w1.astype(compute_dtype)
        w2 = w2.astype(compute_dtype)

    xp = jnp.pad(x, ((0, B_p - B), (0, D_in_p - D_in)))
    w1p = jnp.pad(w1, ((0, D_in_p - D_in), (0, H_p - H)))
    w2p = jnp.pad(w2, ((0, H_p - H), (0, D_out_p - D_out)))
    b1p = jnp.pad(b1.reshape(1, H).astype(jnp.float32), ((0, 0), (0, H_p - H)))
    b2p = jnp.pad(b2.reshape(1, D_out).astype(jnp.float32),
                  ((0, 0), (0, D_out_p - D_out)))

    act_bytes = jnp.dtype(xp.dtype).itemsize
    w_bytes = jnp.dtype(w1p.dtype).itemsize
    out_bytes = jnp.dtype(out_dtype).itemsize

    # --- Explicit VMEM budget (double-buffered x/out tiles + resident weights
    #     worst-case double-buffered + f32 intermediates), with 2x headroom,
    #     clamped to stay inside the v7x 64 MiB physical VMEM.
    vmem_bytes = (
        2 * block_batch * D_in_p * act_bytes
        + 2 * block_batch * D_out_p * out_bytes
        + 2 * (D_in_p * H_p + H_p * D_out_p) * w_bytes
        + 2 * (H_p + D_out_p) * 4
        + block_batch * (H_p + D_out_p) * 4
    )
    vmem_limit = int(min(max(2 * vmem_bytes, 32 * 1024 * 1024),
                         60 * 1024 * 1024))

    # --- Scheduler hint for XLA when the MLP is embedded in a larger graph.
    cost = pl.CostEstimate(
        flops=2 * B_p * (D_in_p * H_p + H_p * D_out_p),
        transcendentals=0,
        bytes_accessed=int(
            B_p * D_in_p * act_bytes
            + (D_in_p * H_p + H_p * D_out_p) * w_bytes
            + (H_p + D_out_p) * 4
            + B_p * D_out_p * out_bytes),
    )

    def build(single_buffer_weights):
        # Weights/biases never change block index -> request single buffering
        # so their resident VMEM footprint is not doubled for nothing.
        wkw = {}
        if single_buffer_weights and hasattr(pl, "Buffered"):
            wkw = dict(pipeline_mode=pl.Buffered(1))
        in_specs = [
            pl.BlockSpec((block_batch, D_in_p), lambda i: (i, 0)),       # x tile
            pl.BlockSpec((D_in_p, H_p), lambda i: (0, 0), **wkw),        # W1
            pl.BlockSpec((1, H_p), lambda i: (0, 0), **wkw),             # b1
            pl.BlockSpec((H_p, D_out_p), lambda i: (0, 0), **wkw),       # W2
            pl.BlockSpec((1, D_out_p), lambda i: (0, 0), **wkw),         # b2
        ]
        return pl.pallas_call(
            mlp_kernel,
            out_shape=jax.ShapeDtypeStruct((B_p, D_out_p), out_dtype),
            grid_spec=pltpu.PrefetchScalarGridSpec(
                num_scalar_prefetch=0,
                grid=grid,
                in_specs=in_specs,
                out_specs=pl.BlockSpec((block_batch, D_out_p),
                                       lambda i: (i, 0)),
            ),
            compiler_params=pltpu.CompilerParams(
                dimension_semantics=("parallel",),
                vmem_limit_bytes=vmem_limit,
            ),
            cost_estimate=cost,
        )

    try:
        out_p = build(True)(xp, w1p, b1p, w2p, b2p)
    except Exception:
        # pl.Buffered(1) not supported by this jax/Mosaic build -> fall back to
        # default (double-buffered) resident-weight specs.
        out_p = build(False)(xp, w1p, b1p, w2p, b2p)

    # Strip batch padding and the lane padding of the output features.
    return out_p[:B, :D_out]


def init_params(key, input_dim, hidden_dim, output_dim, dtype=jnp.float32):
    """Deterministic nn.Linear-style init: U(-1/sqrt(fan_in), 1/sqrt(fan_in))."""
    k1, k2, k3, k4 = jax.random.split(key, 4)
    bound1 = 1.0 / (input_dim ** 0.5)
    bound2 = 1.0 / (hidden_dim ** 0.5)
    # Stored as [in, out] (transposed vs PyTorch's [out, in]).
    w1 = jax.random.uniform(k1, (input_dim, hidden_dim), dtype, -bound1, bound1)
    b1 = jax.random.uniform(k2, (1, hidden_dim), dtype, -bound1, bound1)
    w2 = jax.random.uniform(k3, (hidden_dim, output_dim), dtype, -bound2, bound2)
    b2 = jax.random.uniform(k4, (1, output_dim), dtype, -bound2, bound2)
    return w1, b1, w2, b2


if __name__ == "__main__":
    key = jax.random.PRNGKey(0)
    kx, kp = jax.random.split(key)

    batch, input_dim, hidden_dim, output_dim = 8, 32, 64, 16
    x = jax.random.normal(kx, (batch, input_dim), dtype=jnp.float32)
    w1, b1, w2, b2 = init_params(kp, input_dim, hidden_dim, output_dim)

    out = mlp_forward(x, w1, b1, w2, b2)
    out = jax.block_until_ready(out)

    # Reference check in plain JAX (same semantics as the PyTorch forward:
    # linear1 -> linear2 -> clamp(0, 10); self.relu is never applied).
    ref = jnp.clip((x @ w1 + b1) @ w2 + b2, 0.0, 10.0)
    assert out.shape == (batch, output_dim)
    assert jnp.allclose(out, ref, atol=1e-5, rtol=1e-5)

    print("KERNEL_OK")
</pallas_src>

<mosaic_0001>
module attributes {stable_mosaic.version = 11 : i64} {
  func.func @mlp_kernel(%arg0: i32, %arg1: memref<8x128xf32, #tpu.memory_space<vmem>>, %arg2: memref<128x128xf32, #tpu.memory_space<vmem>>, %arg3: memref<1x128xf32, #tpu.memory_space<vmem>>, %arg4: memref<128x128xf32, #tpu.memory_space<vmem>>, %arg5: memref<1x128xf32, #tpu.memory_space<vmem>>, %arg6: memref<8x128xf32, #tpu.memory_space<vmem>>) attributes {dimension_semantics = [#tpu.dimension_semantics<parallel>], iteration_bounds = array<i64: 1>, scalar_prefetch = 0 : i64, scratch_operands = 0 : i64, tpu.core_type = #tpu.core_type<tc>, window_params = [{transform_indices = @transform_0, window_bounds = array<i64: 8, 128>}, {pipeline_mode = #tpu.pipeline_mode<synchronous>, transform_indices = @transform_1, window_bounds = array<i64: 128, 128>}, {pipeline_mode = #tpu.pipeline_mode<synchronous>, transform_indices = @transform_2, window_bounds = array<i64: 1, 128>}, {pipeline_mode = #tpu.pipeline_mode<synchronous>, transform_indices = @transform_3, window_bounds = array<i64: 128, 128>}, {pipeline_mode = #tpu.pipeline_mode<synchronous>, transform_indices = @transform_4, window_bounds = array<i64: 1, 128>}, {transform_indices = @transform_5, window_bounds = array<i64: 8, 128>}]} {
    %c0 = arith.constant 0 : index
    %c0_0 = arith.constant 0 : index
    %0 = vector.load %arg1[%c0, %c0_0] : memref<8x128xf32, #tpu.memory_space<vmem>>, vector<8x128xf32>
    %c0_1 = arith.constant 0 : index
    %c0_2 = arith.constant 0 : index
    %1 = vector.load %arg2[%c0_1, %c0_2] : memref<128x128xf32, #tpu.memory_space<vmem>>, vector<128x128xf32>
    %cst = arith.constant dense<0.000000e+00> : vector<8x128xf32>
    %2 = tpu.matmul %0, %1, %cst {dimension_numbers = #tpu.dot_dimension_numbers<[1], [0], [0], [1], [0, 0, 1, 1], [], []>} : vector<8x128xf32>, vector<128x128xf32>, vector<8x128xf32> -> vector<8x128xf32>
    %c0_3 = arith.constant 0 : index
    %c0_4 = arith.constant 0 : index
    %3 = vector.load %arg3[%c0_3, %c0_4] : memref<1x128xf32, #tpu.memory_space<vmem>>, vector<1x128xf32>
    %4 = vector.broadcast %3 : vector<1x128xf32> to vector<8x128xf32>
    %5 = arith.addf %2, %4 : vector<8x128xf32>
    %c0_5 = arith.constant 0 : index
    %c0_6 = arith.constant 0 : index
    %6 = vector.load %arg4[%c0_5, %c0_6] : memref<128x128xf32, #tpu.memory_space<vmem>>, vector<128x128xf32>
    %cst_7 = arith.constant dense<0.000000e+00> : vector<8x128xf32>
    %7 = tpu.matmul %5, %6, %cst_7 {dimension_numbers = #tpu.dot_dimension_numbers<[1], [0], [0], [1], [0, 0, 1, 1], [], []>} : vector<8x128xf32>, vector<128x128xf32>, vector<8x128xf32> -> vector<8x128xf32>
    %c0_8 = arith.constant 0 : index
    %c0_9 = arith.constant 0 : index
    %8 = vector.load %arg5[%c0_8, %c0_9] : memref<1x128xf32, #tpu.memory_space<vmem>>, vector<1x128xf32>
    %9 = vector.broadcast %8 : vector<1x128xf32> to vector<8x128xf32>
    %10 = arith.addf %7, %9 : vector<8x128xf32>
    %cst_10 = arith.constant 0.000000e+00 : f32
    %cst_11 = arith.constant 1.000000e+01 : f32
    %11 = vector.broadcast %cst_10 : f32 to vector<8x128xf32>
    %12 = arith.maximumf %11, %10 : vector<8x128xf32>
    %13 = vector.broadcast %cst_11 : f32 to vector<8x128xf32>
    %14 = arith.minimumf %13, %12 : vector<8x128xf32>
    %c0_12 = arith.constant 0 : index
    %c0_13 = arith.constant 0 : index
    %15 = vector.load %arg6[%c0_12, %c0_13] : memref<8x128xf32, #tpu.memory_space<vmem>>, vector<8x128xf32>
    tpu.vector_store %arg6[%c0_12, %c0_13], %14 {strides = array<i32>} : memref<8x128xf32, #tpu.memory_space<vmem>>, vector<8x128xf32>,
    return
  }
  func.func @transform_0(%arg0: i32) -> (i32, i32) {
    %c0_i32 = arith.constant 0 : i32
    %c0_i32_0 = arith.constant 0 : i32
    return %arg0, %c0_i32 : i32, i32
  }
  func.func @transform_1(%arg0: i32) -> (i32, i32) {
    %c0_i32 = arith.constant 0 : i32
    %c0_i32_0 = arith.constant 0 : i32
    %c0_i32_1 = arith.constant 0 : i32
    return %c0_i32, %c0_i32_0 : i32, i32
  }
  func.func @transform_2(%arg0: i32) -> (i32, i32) {
    %c0_i32 = arith.constant 0 : i32
    %c0_i32_0 = arith.constant 0 : i32
    %c0_i32_1 = arith.constant 0 : i32
    return %c0_i32, %c0_i32_0 : i32, i32
  }
  func.func @transform_3(%arg0: i32) -> (i32, i32) {
    %c0_i32 = arith.constant 0 : i32
    %c0_i32_0 = arith.constant 0 : i32
    %c0_i32_1 = arith.constant 0 : i32
    return %c0_i32, %c0_i32_0 : i32, i32
  }
  func.func @transform_4(%arg0: i32) -> (i32, i32) {
    %c0_i32 = arith.constant 0 : i32
    %c0_i32_0 = arith.constant 0 : i32
    %c0_i32_1 = arith.constant 0 : i32
    return %c0_i32, %c0_i32_0 : i32, i32
  }
  func.func @transform_5(%arg0: i32) -> (i32, i32) {
    %c0_i32 = arith.constant 0 : i32
    %c0_i32_0 = arith.constant 0 : i32
    return %arg0, %c0_i32 : i32, i32
  }
}

module attributes {stable_mosaic.version = 11 : i64} {
  func.func @mlp_kernel(%arg0: i32, %arg1: memref<8x128xf32, #tpu.memory_space<vmem>>, %arg2: memref<128x128xf32, #tpu.memory_space<vmem>>, %arg3: memref<1x128xf32, #tpu.memory_space<vmem>>, %arg4: memref<128x128xf32, #tpu.memory_space<vmem>>, %arg5: memref<1x128xf32, #tpu.memory_space<vmem>>, %arg6: memref<8x128xf32, #tpu.memory_space<vmem>>) attributes {dimension_semantics = [#tpu.dimension_semantics<parallel>], iteration_bounds = array<i64: 1>, scalar_prefetch = 0 : i64, scratch_operands = 0 : i64, tpu.core_type = #tpu.core_type<tc>, window_params = [{transform_indices = @transform_0, window_bounds = array<i64: 8, 128>}, {pipeline_mode = #tpu.pipeline_mode<synchronous>, transform_indices = @transform_1, window_bounds = array<i64: 128, 128>}, {pipeline_mode = #tpu.pipeline_mode<synchronous>, transform_indices = @transform_2, window_bounds = array<i64: 1, 128>}, {pipeline_mode = #tpu.pipeline_mode<synchronous>, transform_indices = @transform_3, window_bounds = array<i64: 128, 128>}, {pipeline_mode = #tpu.pipeline_mode<synchronous>, transform_indices = @transform_4, window_bounds = array<i64: 1, 128>}, {transform_indices = @transform_5, window_bounds = array<i64: 8, 128>}]} {
    %c0 = arith.constant 0 : index
    %c0_0 = arith.constant 0 : index
    %0 = vector.load %arg1[%c0, %c0_0] : memref<8x128xf32, #tpu.memory_space<vmem>>, vector<8x128xf32>
    %c0_1 = arith.constant 0 : index
    %c0_2 = arith.constant 0 : index
    %1 = vector.load %arg2[%c0_1, %c0_2] : memref<128x128xf32, #tpu.memory_space<vmem>>, vector<128x128xf32>
    %cst = arith.constant dense<0.000000e+00> : vector<8x128xf32>
    %2 = tpu.matmul %0, %1, %cst {dimension_numbers = #tpu.dot_dimension_numbers<[1], [0], [0], [1], [0, 0, 1, 1], [], []>} : vector<8x128xf32>, vector<128x128xf32>, vector<8x128xf32> -> vector<8x128xf32>
    %c0_3 = arith.constant 0 : index
    %c0_4 = arith.constant 0 : index
    %3 = vector.load %arg3[%c0_3, %c0_4] : memref<1x128xf32, #tpu.memory_space<vmem>>, vector<1x128xf32>
    %4 = vector.broadcast %3 : vector<1x128xf32> to vector<8x128xf32>
    %5 = arith.addf %2, %4 : vector<8x128xf32>
    %c0_5 = arith.constant 0 : index
    %c0_6 = arith.constant 0 : index
    %6 = vector.load %arg4[%c0_5, %c0_6] : memref<128x128xf32, #tpu.memory_space<vmem>>, vector<128x128xf32>
    %cst_7 = arith.constant dense<0.000000e+00> : vector<8x128xf32>
    %7 = tpu.matmul %5, %6, %cst_7 {dimension_numbers = #tpu.dot_dimension_numbers<[1], [0], [0], [1], [0, 0, 1, 1], [], []>} : vector<8x128xf32>, vector<128x128xf32>, vector<8x128xf32> -> vector<8x128xf32>
    %c0_8 = arith.constant 0 : index
    %c0_9 = arith.constant 0 : index
    %8 = vector.load %arg5[%c0_8, %c0_9] : memref<1x128xf32, #tpu.memory_space<vmem>>, vector<1x128xf32>
    %9 = vector.broadcast %8 : vector<1x128xf32> to vector<8x128xf32>
    %10 = arith.addf %7, %9 : vector<8x128xf32>
    %cst_10 = arith.constant 0.000000e+00 : f32
    %cst_11 = arith.constant 1.000000e+01 : f32
    %11 = vector.broadcast %cst_10 : f32 to vector<8x128xf32>
    %12 = arith.maximumf %11, %10 : vector<8x128xf32>
    %13 = vector.broadcast %cst_11 : f32 to vector<8x128xf32>
    %14 = arith.minimumf %13, %12 : vector<8x128xf32>
    %c0_12 = arith.constant 0 : index
    %c0_13 = arith.constant 0 : index
    %15 = vector.load %arg6[%c0_12, %c0_13] : memref<8x128xf32, #tpu.memory_space<vmem>>, vector<8x128xf32>
    tpu.vector_store %arg6[%c0_12, %c0_13], %14 {strides = array<i32>} : memref<8x128xf32, #tpu.memory_space<vmem>>, vector<8x128xf32>,
    return
  }
  func.func @transform_0(%arg0: i32) -> (i32, i32) {
    %c0_i32 = arith.constant 0 : i32
    %c0_i32_0 = arith.constant 0 : i32
    return %arg0, %c0_i32 : i32, i32
  }
  func.func @transform_1(%arg0: i32) -> (i32, i32) {
    %c0_i32 = arith.constant 0 : i32
    %c0_i32_0 = arith.constant 0 : i32
    %c0_i32_1 = arith.constant 0 : i32
    return %c0_i32, %c0_i32_0 : i32, i32
  }
  func.func @transform_2(%arg0: i32) -> (i32, i32) {
    %c0_i32 = arith.constant 0 : i32
    %c0_i32_0 = arith.constant 0 : i32
    %c0_i32_1 = arith.constant 0 : i32
    return %c0_i32, %c0_i32_0 : i32, i32
  }
  func.func @transform_3(%arg0: i32) -> (i32, i32) {
    %c0_i32 = arith.constant 0 : i32
    %c0_i32_0 = arith.constant 0 : i32
    %c0_i32_1 = arith.constant 0 : i32
    return %c0_i32, %c0_i32_0 : i32, i32
  }
  func.func @transform_4(%arg0: i32) -> (i32, i32) {
    %c0_i32 = arith.constant 0 : i32
    %c0_i32_0 = arith.constant 0 : i32
    %c0_i32_1 = arith.constant 0 : i32
    return %c0_i32, %c0_i32_0 : i32, i32
  }
  func.func @transform_5(%arg0: i32) -> (i32, i32) {
    %c0_i32 = arith.constant 0 : i32
    %c0_i32_0 = arith.constant 0 : i32
    return %arg0, %c0_i32 : i32, i32
  }
}

</mosaic_0001>

<llo_original>
// kernel: tpu_custom_call.1
$region0: #{tpu_custom_call.1}
  #allocation0 [shape = 'u32[]', space=smem, size = 0x4, offset = 0x4, fixed_abs, tag = 'smem constant byte address 0x4 - core index']
  #allocation1 [shape = 'u32[72,128]{1,0:T(1,128)}', space=vmem, size = 0x9000, scoped, tag = 'internal scratch']
  %s0 = inlined_call_operand.hbm [shape: f32[8,128], index: 0, kind: input, shape index: {}]
  %s1 = inlined_call_operand.hbm [shape: f32[128,128], index: 1, kind: input, shape index: {}]
  %s2 = inlined_call_operand.vmem [shape: f32[1,128], index: 2, kind: input, shape index: {}]
  %s3 = inlined_call_operand.hbm [shape: f32[128,128], index: 3, kind: input, shape index: {}]
  %s4 = inlined_call_operand.vmem [shape: f32[1,128], index: 4, kind: input, shape index: {}]
  %s5 = inlined_call_operand.hbm [shape: f32[8,128], index: 5, kind: output, shape index: {}]
  %s6 = sld [smem:[#allocation0]]
  $region42: #{tpu_custom_call.1} parent=0
    _
  %s8 = ssub.s32 1, %s6
  %s9 = scalar_select 0, %s8, %s6
  $region1: #{tpu_custom_call.1} parent=0
    #allocation2 [shape = 'u8[4096]{0}', space=vmem, size = 0x1000, scoped, tag = 'input window, operand 0, single buffered']
    #allocation3 [shape = 's32[1]{0}', space=sflag, size = 0x4, scoped, tag = 'scoped memory for tpu_custom_call.1']
    #allocation4 [shape = 's32[1]{0}', space=sflag, size = 0x4, scoped, tag = 'scoped memory for tpu_custom_call.1']
    #allocation5 [shape = 'u8[65536]{0}', space=vmem, size = 0x10000, scoped, tag = 'input window, operand 1, single buffered']
    #allocation6 [shape = 's32[1]{0}', space=sflag, size = 0x4, scoped, tag = 'scoped memory for tpu_custom_call.1']
    #allocation7 [shape = 'u8[65536]{0}', space=vmem, size = 0x10000, scoped, tag = 'input window, operand 3, single buffered']
    #allocation8 [shape = 'u8[4096]{0}', space=vmem, size = 0x1000, scoped, tag = 'output window, operand 0, single buffered']
    %10 = vsyncpa [#allocation3], 0
    %11 = vsyncpa [#allocation6], 0
    %12 = vsyncpa [#allocation4], 0
    // Predicated region
    $region2: #{tpu_custom_call.1} parent=1 // pred_check
      _
    $region3: #{tpu_custom_call.1} parent=1 // pred_check_branch
      %14 = sbr.rel (0) target = $region5
    $region4: #{tpu_custom_call.1} parent=1 // pred_region
      %16 = vsyncadd [#allocation3], 0
      %s18 = sshll.u32 %s0, 4
      %s19 = int_to_ptr.hbm [resolvable:$true] %s18
      %s20 = sshll.u32 [#allocation2], 4
      %s21 = int_to_ptr.vmem [resolvable:$true] %s20
      %23 = dma.hbm_to_vmem [thread:$0]  %s19, 128, %s21, [#allocation3]
    $region5: #{tpu_custom_call.1} parent=1 // pred_fallthru
      _
    // Predicated region
    $region6: #{tpu_custom_call.1} parent=1 // pred_check
      _
    $region7: #{tpu_custom_call.1} parent=1 // pred_check_branch
      %25 = sbr.rel (0) target = $region9
    $region8: #{tpu_custom_call.1} parent=1 // pred_region
      %27 = vsyncadd [#allocation6], 0
      %s28 = sshll.u32 %s1, 4
      %s29 = int_to_ptr.hbm [resolvable:$true] %s28
      %s30 = sshll.u32 [#allocation5], 4
      %s31 = int_to_ptr.vmem [resolvable:$true] %s30
      %36 = dma.hbm_to_vmem [thread:$0]  %s29, 2048, %s31, [#allocation6], 128, 128, 8
    $region9: #{tpu_custom_call.1} parent=1 // pred_fallthru
      _
    // Predicated region
    $region10: #{tpu_custom_call.1} parent=1 // pred_check
      _
    $region11: #{tpu_custom_call.1} parent=1 // pred_check_branch
      %38 = sbr.rel (0) target = $region13
    $region12: #{tpu_custom_call.1} parent=1 // pred_region
      _
    $region13: #{tpu_custom_call.1} parent=1 // pred_fallthru
      _
    // Predicated region
    $region14: #{tpu_custom_call.1} parent=1 // pred_check
      _
    $region15: #{tpu_custom_call.1} parent=1 // pred_check_branch
      %40 = sbr.rel (0) target = $region17
    $region16: #{tpu_custom_call.1} parent=1 // pred_region
      %42 = vsyncadd [#allocation6], 0
      %s43 = sshll.u32 %s3, 4
      %s44 = int_to_ptr.hbm [resolvable:$true] %s43
      %s45 = sshll.u32 [#allocation7], 4
      %s46 = int_to_ptr.vmem [resolvable:$true] %s45
      %51 = dma.hbm_to_vmem [thread:$0]  %s44, 2048, %s46, [#allocation6], 128, 128, 8
    $region17: #{tpu_custom_call.1} parent=1 // pred_fallthru
      _
    // Predicated region
    $region18: #{tpu_custom_call.1} parent=1 // pred_check
      _
    $region19: #{tpu_custom_call.1} parent=1 // pred_check_branch
      %53 = sbr.rel (0) target = $region21
    $region20: #{tpu_custom_call.1} parent=1 // pred_region
      _
    $region21: #{tpu_custom_call.1} parent=1 // pred_fallthru
      _
    // Predicated region
    $region22: #{tpu_custom_call.1} parent=1 // pred_check
      _
    $region23: #{tpu_custom_call.1} parent=1 // pred_check_branch
      %55 = sbr.rel (0) target = $region25
    $region24: #{tpu_custom_call.1} parent=1 // pred_region
      %57 = dma.done [#allocation3], 128
    $region25: #{tpu_custom_call.1} parent=1 // pred_fallthru
      _
    // Predicated region
    $region26: #{tpu_custom_call.1} parent=1 // pred_check
      _
    $region27: #{tpu_custom_call.1} parent=1 // pred_check_branch
      %59 = sbr.rel (0) target = $region29
    $region28: #{tpu_custom_call.1} parent=1 // pred_region
      %61 = dma.done [#allocation6], 2048
    $region29: #{tpu_custom_call.1} parent=1 // pred_fallthru
      _
    // Predicated region
    $region30: #{tpu_custom_call.1} parent=1 // pred_check
      _
    $region31: #{tpu_custom_call.1} parent=1 // pred_check_branch
      %63 = sbr.rel (0) target = $region33
    $region32: #{tpu_custom_call.1} parent=1 // pred_region
      %65 = dma.done [#allocation6], 2048
    $region33: #{tpu_custom_call.1} parent=1 // pred_fallthru
      _
    %v66 = vld [vmem:[#allocation2] sm:$0xff]
    %v67 = vld [vmem:[#allocation5] sm:$0xff]
    %v68 = vld [vmem:[#allocation5 + $0x8] sm:$0xff]
    %v69 = vld [vmem:[#allocation5 + $0x10] sm:$0xff]
    %v70 = vld [vmem:[#allocation5 + $0x18] sm:$0xff]
    %v71 = vld [vmem:[#allocation5 + $0x20] sm:$0xff]
    %v72 = vld [vmem:[#allocation5 + $0x28] sm:$0xff]
    %v73 = vld [vmem:[#allocation5 + $0x30] sm:$0xff]
    %v74 = vld [vmem:[#allocation5 + $0x38] sm:$0xff]
    %v75 = vld [vmem:[#allocation5 + $0x40] sm:$0xff]
    %v76 = vld [vmem:[#allocation5 + $0x48] sm:$0xff]
    %v77 = vld [vmem:[#allocation5 + $0x50] sm:$0xff]
    %v78 = vld [vmem:[#allocation5 + $0x58] sm:$0xff]
    %v79 = vld [vmem:[#allocation5 + $0x60] sm:$0xff]
    %v80 = vld [vmem:[#allocation5 + $0x68] sm:$0xff]
    %v81 = vld [vmem:[#allocation5 + $0x70] sm:$0xff]
    %v82 = vld [vmem:[#allocation5 + $0x78] sm:$0xff]
    %v83 = vld [vmem:[%s2] sm:$0x1]
    %v85 = vperm.slane %v83, 0
    %87 = vmatpush.msra.mxu0 %v82
    %88 = vmatpush.msra.mxu0 %v81
    %89 = vmatpush.msra.mxu0 %v80
    %90 = vmatpush.msra.mxu0 %v79
    %91 = vmatpush.msra.mxu0 %v78
    %92 = vmatpush.msra.mxu0 %v77
    %93 = vmatpush.msra.mxu0 %v76
    %94 = vmatpush.msra.mxu0 %v75
    %95 = vmatpush.msra.mxu0 %v74
    %96 = vmatpush.msra.mxu0 %v73
    %97 = vmatpush.msra.mxu0 %v72
    %98 = vmatpush.msra.mxu0 %v71
    %99 = vmatpush.msra.mxu0 %v70
    %100 = vmatpush.msra.mxu0 %v69
    %101 = vmatpush.msra.mxu0 %v68
    %102 = vmatpush.msra.mxu0 %v67
    %103 = vmatmul.f32.gmra.mxu0 %v66
    %v104 = vpop.f32.mrf.mxu0
    %v105 = vadd.f32 %v85, %v104
    %106 = vdwg.mxu0
    %v107 = vld [vmem:[#allocation7] sm:$0xff]
    %v108 = vld [vmem:[#allocation7 + $0x8] sm:$0xff]
    %v109 = vld [vmem:[#allocation7 + $0x10] sm:$0xff]
    %v110 = vld [vmem:[#allocation7 + $0x18] sm:$0xff]
    %v111 = vld [vmem:[#allocation7 + $0x20] sm:$0xff]
    %v112 = vld [vmem:[#allocation7 + $0x28] sm:$0xff]
    %v113 = vld [vmem:[#allocation7 + $0x30] sm:$0xff]
    %v114 = vld [vmem:[#allocation7 + $0x38] sm:$0xff]
    %v115 = vld [vmem:[#allocation7 + $0x40] sm:$0xff]
    %v116 = vld [vmem:[#allocation7 + $0x48] sm:$0xff]
    %v117 = vld [vmem:[#allocation7 + $0x50] sm:$0xff]
    %v118 = vld [vmem:[#allocation7 + $0x58] sm:$0xff]
    %v119 = vld [vmem:[#allocation7 + $0x60] sm:$0xff]
    %v120 = vld [vmem:[#allocation7 + $0x68] sm:$0xff]
    %v121 = vld [vmem:[#allocation7 + $0x70] sm:$0xff]
    %v122 = vld [vmem:[#allocation7 + $0x78] sm:$0xff]
    %v123 = vld [vmem:[%s4] sm:$0x1]
    %v125 = vperm.slane %v123, 0
    %127 = vmatpush.msra.mxu0 %v122
    %128 = vmatpush.msra.mxu0 %v121
    %129 = vmatpush.msra.mxu0 %v120
    %130 = vmatpush.msra.mxu0 %v119
    %131 = vmatpush.msra.mxu0 %v118
    %132 = vmatpush.msra.mxu0 %v117
    %133 = vmatpush.msra.mxu0 %v116
    %134 = vmatpush.msra.mxu0 %v115
    %135 = vmatpush.msra.mxu0 %v114
    %136 = vmatpush.msra.mxu0 %v113
    %137 = vmatpush.msra.mxu0 %v112
    %138 = vmatpush.msra.mxu0 %v111
    %139 = vmatpush.msra.mxu0 %v110
    %140 = vmatpush.msra.mxu0 %v109
    %141 = vmatpush.msra.mxu0 %v108
    %142 = vmatpush.msra.mxu0 %v107
    %143 = vmatmul.f32.gmra.mxu0 %v105
    %v144 = vpop.f32.mrf.mxu0
    %v145 = vadd.f32 %v125, %v144
    %146 = vdwg.mxu0
    %v147 = vmax.f32 %v145, 0.0
    %v148 = vmin.f32 %v147, 10.0
    %149 = vst [vmem:[#allocation8] sm:$0xff] %v148
    // Predicated region
    $region34: #{tpu_custom_call.1} parent=1 // pred_check
      _
    $region35: #{tpu_custom_call.1} parent=1 // pred_check_branch
      %151 = sbr.rel (0) target = $region37
    $region36: #{tpu_custom_call.1} parent=1 // pred_region
      %153 = vsyncadd [#allocation4], 0
      %s155 = sshll.u32 [#allocation8], 4
      %s156 = int_to_ptr.vmem [resolvable:$true] %s155
      %s157 = sshll.u32 %s5, 4
      %s158 = int_to_ptr.hbm [resolvable:$true] %s157
      %160 = dma.vmem_to_hbm [thread:$0]  %s156, 128, %s158, [#allocation4]
    $region37: #{tpu_custom_call.1} parent=1 // pred_fallthru
      _
    // Predicated region
    $region38: #{tpu_custom_call.1} parent=1 // pred_check
      _
    $region39: #{tpu_custom_call.1} parent=1 // pred_check_branch
      %162 = sbr.rel (0) target = $region41
    $region40: #{tpu_custom_call.1} parent=1 // pred_region
      %164 = dma.done [#allocation4], 128
    $region41: #{tpu_custom_call.1} parent=1 // pred_fallthru
      _
    %165 = vsyncpa [#allocation3], 1
    %166 = vsyncpa [#allocation6], 1
    %167 = vsyncpa [#allocation4], 1

// kernel: tpu_custom_call.1
$region0: #{tpu_custom_call.1}
  #allocation0 [shape = 'u32[]', space=smem, size = 0x4, offset = 0x4, fixed_abs, tag = 'smem constant byte address 0x4 - core index']
  #allocation1 [shape = 'u32[72,128]{1,0:T(1,128)}', space=vmem, size = 0x9000, scoped, tag = 'internal scratch']
  %s0 = inlined_call_operand.hbm [shape: f32[8,128], index: 0, kind: input, shape index: {}]
  %s1 = inlined_call_operand.hbm [shape: f32[128,128], index: 1, kind: input, shape index: {}]
  %s2 = inlined_call_operand.vmem [shape: f32[1,128], index: 2, kind: input, shape index: {}]
  %s3 = inlined_call_operand.hbm [shape: f32[128,128], index: 3, kind: input, shape index: {}]
  %s4 = inlined_call_operand.vmem [shape: f32[1,128], index: 4, kind: input, shape index: {}]
  %s5 = inlined_call_operand.hbm [shape: f32[8,128], index: 5, kind: output, shape index: {}]
  %s6 = sld [smem:[#allocation0]]
  $region42: #{tpu_custom_call.1} parent=0
    _
  %s8 = ssub.s32 1, %s6
  %s9 = scalar_select 0, %s8, %s6
  $region1: #{tpu_custom_call.1} parent=0
    #allocation2 [shape = 'u8[4096]{0}', space=vmem, size = 0x1000, scoped, tag = 'input window, operand 0, single buffered']
    #allocation3 [shape = 's32[1]{0}', space=sflag, size = 0x4, scoped, tag = 'scoped memory for tpu_custom_call.1']
    #allocation4 [shape = 's32[1]{0}', space=sflag, size = 0x4, scoped, tag = 'scoped memory for tpu_custom_call.1']
    #allocation5 [shape = 'u8[65536]{0}', space=vmem, size = 0x10000, scoped, tag = 'input window, operand 1, single buffered']
    #allocation6 [shape = 's32[1]{0}', space=sflag, size = 0x4, scoped, tag = 'scoped memory for tpu_custom_call.1']
    #allocation7 [shape = 'u8[65536]{0}', space=vmem, size = 0x10000, scoped, tag = 'input window, operand 3, single buffered']
    #allocation8 [shape = 'u8[4096]{0}', space=vmem, size = 0x1000, scoped, tag = 'output window, operand 0, single buffered']
    %10 = vsyncpa [#allocation3], 0
    %11 = vsyncpa [#allocation6], 0
    %12 = vsyncpa [#allocation4], 0
    // Predicated region
    $region2: #{tpu_custom_call.1} parent=1 // pred_check
      _
    $region3: #{tpu_custom_call.1} parent=1 // pred_check_branch
      %14 = sbr.rel (0) target = $region5
    $region4: #{tpu_custom_call.1} parent=1 // pred_region
      %16 = vsyncadd [#allocation3], 0
      %s18 = sshll.u32 %s0, 4
      %s19 = int_to_ptr.hbm [resolvable:$true] %s18
      %s20 = sshll.u32 [#allocation2], 4
      %s21 = int_to_ptr.vmem [resolvable:$true] %s20
      %23 = dma.hbm_to_vmem [thread:$0]  %s19, 128, %s21, [#allocation3]
    $region5: #{tpu_custom_call.1} parent=1 // pred_fallthru
      _
    // Predicated region
    $region6: #{tpu_custom_call.1} parent=1 // pred_check
      _
    $region7: #{tpu_custom_call.1} parent=1 // pred_check_branch
      %25 = sbr.rel (0) target = $region9
    $region8: #{tpu_custom_call.1} parent=1 // pred_region
      %27 = vsyncadd [#allocation6], 0
      %s28 = sshll.u32 %s1, 4
      %s29 = int_to_ptr.hbm [resolvable:$true] %s28
      %s30 = sshll.u32 [#allocation5], 4
      %s31 = int_to_ptr.vmem [resolvable:$true] %s30
      %36 = dma.hbm_to_vmem [thread:$0]  %s29, 2048, %s31, [#allocation6], 128, 128, 8
    $region9: #{tpu_custom_call.1} parent=1 // pred_fallthru
      _
    // Predicated region
    $region10: #{tpu_custom_call.1} parent=1 // pred_check
      _
    $region11: #{tpu_custom_call.1} parent=1 // pred_check_branch
      %38 = sbr.rel (0) target = $region13
    $region12: #{tpu_custom_call.1} parent=1 // pred_region
      _
    $region13: #{tpu_custom_call.1} parent=1 // pred_fallthru
      _
    // Predicated region
    $region14: #{tpu_custom_call.1} parent=1 // pred_check
      _
    $region15: #{tpu_custom_call.1} parent=1 // pred_check_branch
      %40 = sbr.rel (0) target = $region17
    $region16: #{tpu_custom_call.1} parent=1 // pred_region
      %42 = vsyncadd [#allocation6], 0
      %s43 = sshll.u32 %s3, 4
      %s44 = int_to_ptr.hbm [resolvable:$true] %s43
      %s45 = sshll.u32 [#allocation7], 4
      %s46 = int_to_ptr.vmem [resolvable:$true] %s45
      %51 = dma.hbm_to_vmem [thread:$0]  %s44, 2048, %s46, [#allocation6], 128, 128, 8
    $region17: #{tpu_custom_call.1} parent=1 // pred_fallthru
      _
    // Predicated region
    $region18: #{tpu_custom_call.1} parent=1 // pred_check
      _
    $region19: #{tpu_custom_call.1} parent=1 // pred_check_branch
      %53 = sbr.rel (0) target = $region21
    $region20: #{tpu_custom_call.1} parent=1 // pred_region
      _
    $region21: #{tpu_custom_call.1} parent=1 // pred_fallthru
      _
    // Predicated region
    $region22: #{tpu_custom_call.1} parent=1 // pred_check
      _
    $region23: #{tpu_custom_call.1} parent=1 // pred_check_branch
      %55 = sbr.rel (0) target = $region25
    $region24: #{tpu_custom_call.1} parent=1 // pred_region
      %57 = dma.done [#allocation3], 128
    $region25: #{tpu_custom_call.1} parent=1 // pred_fallthru
      _
    // Predicated region
    $region26: #{tpu_custom_call.1} parent=1 // pred_check
      _
    $region27: #{tpu_custom_call.1} parent=1 // pred_check_branch
      %59 = sbr.rel (0) target = $region29
    $region28: #{tpu_custom_call.1} parent=1 // pred_region
      %61 = dma.done [#allocation6], 2048
    $region29: #{tpu_custom_call.1} parent=1 // pred_fallthru
      _
    // Predicated region
    $region30: #{tpu_custom_call.1} parent=1 // pred_check
      _
    $region31: #{tpu_custom_call.1} parent=1 // pred_check_branch
      %63 = sbr.rel (0) target = $region33
    $region32: #{tpu_custom_call.1} parent=1 // pred_region
      %65 = dma.done [#allocation6], 2048
    $region33: #{tpu_custom_call.1} parent=1 // pred_fallthru
      _
    %v66 = vld [vmem:[#allocation2] sm:$0xff]
    %v67 = vld [vmem:[#allocation5] sm:$0xff]
    %v68 = vld [vmem:[#allocation5 + $0x8] sm:$0xff]
    %v69 = vld [vmem:[#allocation5 + $0x10] sm:$0xff]
    %v70 = vld [vmem:[#allocation5 + $0x18] sm:$0xff]
    %v71 = vld [vmem:[#allocation5 + $0x20] sm:$0xff]
    %v72 = vld [vmem:[#allocation5 + $0x28] sm:$0xff]
    %v73 = vld [vmem:[#allocation5 + $0x30] sm:$0xff]
    %v74 = vld [vmem:[#allocation5 + $0x38] sm:$0xff]
    %v75 = vld [vmem:[#allocation5 + $0x40] sm:$0xff]
    %v76 = vld [vmem:[#allocation5 + $0x48] sm:$0xff]
    %v77 = vld [vmem:[#allocation5 + $0x50] sm:$0xff]
    %v78 = vld [vmem:[#allocation5 + $0x58] sm:$0xff]
    %v79 = vld [vmem:[#allocation5 + $0x60] sm:$0xff]
    %v80 = vld [vmem:[#allocation5 + $0x68] sm:$0xff]
    %v81 = vld [vmem:[#allocation5 + $0x70] sm:$0xff]
    %v82 = vld [vmem:[#allocation5 + $0x78] sm:$0xff]
    %v83 = vld [vmem:[%s2] sm:$0x1]
    %v85 = vperm.slane %v83, 0
    %87 = vmatpush.msra.mxu0 %v82
    %88 = vmatpush.msra.mxu0 %v81
    %89 = vmatpush.msra.mxu0 %v80
    %90 = vmatpush.msra.mxu0 %v79
    %91 = vmatpush.msra.mxu0 %v78
    %92 = vmatpush.msra.mxu0 %v77
    %93 = vmatpush.msra.mxu0 %v76
    %94 = vmatpush.msra.mxu0 %v75
    %95 = vmatpush.msra.mxu0 %v74
    %96 = vmatpush.msra.mxu0 %v73
    %97 = vmatpush.msra.mxu0 %v72
    %98 = vmatpush.msra.mxu0 %v71
    %99 = vmatpush.msra.mxu0 %v70
    %100 = vmatpush.msra.mxu0 %v69
    %101 = vmatpush.msra.mxu0 %v68
    %102 = vmatpush.msra.mxu0 %v67
    %103 = vmatmul.f32.gmra.mxu0 %v66
    %v104 = vpop.f32.mrf.mxu0
    %v105 = vadd.f32 %v85, %v104
    %106 = vdwg.mxu0
    %v107 = vld [vmem:[#allocation7] sm:$0xff]
    %v108 = vld [vmem:[#allocation7 + $0x8] sm:$0xff]
    %v109 = vld [vmem:[#allocation7 + $0x10] sm:$0xff]
    %v110 = vld [vmem:[#allocation7 + $0x18] sm:$0xff]
    %v111 = vld [vmem:[#allocation7 + $0x20] sm:$0xff]
    %v112 = vld [vmem:[#allocation7 + $0x28] sm:$0xff]
    %v113 = vld [vmem:[#allocation7 + $0x30] sm:$0xff]
    %v114 = vld [vmem:[#allocation7 + $0x38] sm:$0xff]
    %v115 = vld [vmem:[#allocation7 + $0x40] sm:$0xff]
    %v116 = vld [vmem:[#allocation7 + $0x48] sm:$0xff]
    %v117 = vld [vmem:[#allocation7 + $0x50] sm:$0xff]
    %v118 = vld [vmem:[#allocation7 + $0x58] sm:$0xff]
    %v119 = vld [vmem:[#allocation7 + $0x60] sm:$0xff]
    %v120 = vld [vmem:[#allocation7 + $0x68] sm:$0xff]
    %v121 = vld [vmem:[#allocation7 + $0x70] sm:$0xff]
    %v122 = vld [vmem:[#allocation7 + $0x78] sm:$0xff]
    %v123 = vld [vmem:[%s4] sm:$0x1]
    %v125 = vperm.slane %v123, 0
    %127 = vmatpush.msra.mxu0 %v122
    %128 = vmatpush.msra.mxu0 %v121
    %129 = vmatpush.msra.mxu0 %v120
    %130 = vmatpush.msra.mxu0 %v119
    %131 = vmatpush.msra.mxu0 %v118
    %132 = vmatpush.msra.mxu0 %v117
    %133 = vmatpush.msra.mxu0 %v116
    %134 = vmatpush.msra.mxu0 %v115
    %135 = vmatpush.msra.mxu0 %v114
    %136 = vmatpush.msra.mxu0 %v113
    %137 = vmatpush.msra.mxu0 %v112
    %138 = vmatpush.msra.mxu0 %v111
    %139 = vmatpush.msra.mxu0 %v110
    %140 = vmatpush.msra.mxu0 %v109
    %141 = vmatpush.msra.mxu0 %v108
    %142 = vmatpush.msra.mxu0 %v107
    %143 = vmatmul.f32.gmra.mxu0 %v105
    %v144 = vpop.f32.mrf.mxu0
    %v145 = vadd.f32 %v125, %v144
    %146 = vdwg.mxu0
    %v147 = vmax.f32 %v145, 0.0
    %v148 = vmin.f32 %v147, 10.0
    %149 = vst [vmem:[#allocation8] sm:$0xff] %v148
    // Predicated region
    $region34: #{tpu_custom_call.1} parent=1 // pred_check
      _
    $region35: #{tpu_custom_call.1} parent=1 // pred_check_branch
      %151 = sbr.rel (0) target = $region37
    $region36: #{tpu_custom_call.1} parent=1 // pred_region
      %153 = vsyncadd [#allocation4], 0
      %s155 = sshll.u32 [#allocation8], 4
      %s156 = int_to_ptr.vmem [resolvable:$true] %s155
      %s157 = sshll.u32 %s5, 4
      %s158 = int_to_ptr.hbm [resolvable:$true] %s157
      %160 = dma.vmem_to_hbm [thread:$0]  %s156, 128, %s158, [#allocation4]
    $region37: #{tpu_custom_call.1} parent=1 // pred_fallthru
      _
    // Predicated region
    $region38: #{tpu_custom_call.1} parent=1 // pred_check
      _
    $region39: #{tpu_custom_call.1} parent=1 // pred_check_branch
      %162 = sbr.rel (0) target = $region41
    $region40: #{tpu_custom_call.1} parent=1 // pred_region
      %164 = dma.done [#allocation4], 128
    $region41: #{tpu_custom_call.1} parent=1 // pred_fallthru
      _
    %165 = vsyncpa [#allocation3], 1
    %166 = vsyncpa [#allocation6], 1
    %167 = vsyncpa [#allocation4], 1

</llo_original>
